<compile_context>
chip_gen: v7x
topology: tpu7x:2x2x1
jax: 0.10.0
libtpu: 0.0.40
codegen_flags: <defaults>
</compile_context>

<pallas_src>
import jax
import jax.numpy as jnp
from jax.experimental import pallas as pl
from jax.experimental.pallas import tpu as pltpu

# Small shapes consistent with the module's forward.
B = 2          # batch
S = 8          # sequence length
H = 32         # hidden_size (bert-base would be 768; small synthetic stand-in)
L = 28         # num_labels (goemotions-original has 28 emotion labels)
T_HID = 128    # threshold_layer intermediate width (hard-coded 128 in the module)
VOCAB = 64     # synthetic vocab for the stand-in embedding

B_PAD = 8              # sublane-padded batch (full-vreg loads / one unmasked store)
OUT_W = 128            # lane-dense output width (logits in [:L], threshold at col L)
C1 = 128               # W1 block width; Wp block occupies cols [128:256) (zero-padded)
C2 = 256               # start of Wc block (128-lane aligned)
SLAB_COLS = 384        # 3 lane groups of 128
SLAB_ROWS = H + 2      # H weight rows + 1 bias row + 1 (w2^T, b2, selector) row


def head_kernel(cls_ref, slab_ref, out_ref):
    """Packed-slab head (all slab slices start on 128-lane boundaries):
       z       = cls @ [W1 | Wp_pad] + [b1 | bp_pad]    (one 256-wide MXU push)
       h       = relu(z[:, :128]);  pooled = tanh(z[:, 128:128+H])
       logits  = pooled @ Wc_pad + bc_pad               [8, 128] (cols >= L are 0)
       thr     = sigmoid(sum(h * w2^T, -1) + b2)        (VPU mul + XLU lane-reduce)
       out     = logits + thr * sel                     (thr lands in column L)
    """
    cls = cls_ref[...]                                           # [8, H]

    # ---- fused pooler + threshold-layer-1 matmul (256-lane-wide result) ----
    w_s1 = slab_ref[:H, :C2]                                     # [H, 256] = [W1 | Wp_pad]
    b_s1 = slab_ref[H:H + 1, :C2]                                # [1, 256] = [b1 | bp_pad]
    z = jnp.dot(cls, w_s1, preferred_element_type=jnp.float32) + b_s1   # [8, 256]

    h = jnp.maximum(z[:, :T_HID], 0.0)                           # [8, 128]
    pooled = jnp.tanh(z[:, T_HID:T_HID + H])                     # [8, H]

    # ---- classifier head (weights zero-padded to 128 output lanes) ---------
    wc = slab_ref[:H, C2:]                                       # [H, 128]
    bc = slab_ref[H:H + 1, C2:]                                  # [1, 128]
    logits_pad = jnp.dot(pooled, wc, preferred_element_type=jnp.float32) + bc   # [8, 128]

    # ---- threshold_layer second Linear (128 -> 1): VPU mul + lane reduce ---
    w2t = slab_ref[H + 1:H + 2, :T_HID]                          # [1, 128]
    b2 = slab_ref[H + 1:H + 2, T_HID:T_HID + 1]                  # [1, 1] (lane 128)
    sel = slab_ref[H + 1:H + 2, C2:]                             # [1, 128] one-hot(L)
    t = jnp.sum(h * w2t, axis=-1, keepdims=True) + b2            # [8, 1]
    thr = jax.nn.sigmoid(t)

    # Single lane-dense (8 x 128) unmasked store.
    out_ref[...] = logits_pad + thr * sel                        # [8, 128]


def make_params(key):
    ks = jax.random.split(key, 10)
    scale = 0.05
    return {
        "emb": jax.random.normal(ks[0], (VOCAB, H), jnp.float32) * scale,
        "wp":  jax.random.normal(ks[1], (H, H), jnp.float32) * scale,
        "bp":  jax.random.normal(ks[2], (1, H), jnp.float32) * scale,
        "wc":  jax.random.normal(ks[3], (H, L), jnp.float32) * scale,
        "bc":  jax.random.normal(ks[4], (1, L), jnp.float32) * scale,
        "w1":  jax.random.normal(ks[5], (H, T_HID), jnp.float32) * scale,
        "b1":  jax.random.normal(ks[6], (1, T_HID), jnp.float32) * scale,
        "w2":  jax.random.normal(ks[7], (T_HID, 1), jnp.float32) * scale,
        "b2":  jax.random.normal(ks[8], (1, 1), jnp.float32) * scale,
    }


def pack_params(params):
    """Pack all head parameters into a single [34, 384] fp32 slab (one DMA).
       Every segment starts on a 128-lane boundary:
         rows [0:H)  cols [0:128)    -> W1        row H  cols [0:128)   -> b1
         rows [0:H)  cols [128:160)  -> Wp        row H  cols [128:160) -> bp
                     cols [160:256)  -> zero pad (so stage-1 result is 256 wide)
         rows [0:H)  cols [256:284)  -> Wc        row H  cols [256:284) -> bc
         row H+1: cols [0:128) -> w2^T, col 128 -> b2, col 256+L -> 1.0 (selector)
    """
    slab = jnp.zeros((SLAB_ROWS, SLAB_COLS), jnp.float32)
    slab = slab.at[:H, :T_HID].set(params["w1"])
    slab = slab.at[H, :T_HID].set(params["b1"][0])
    slab = slab.at[:H, C1:C1 + H].set(params["wp"])
    slab = slab.at[H, C1:C1 + H].set(params["bp"][0])
    slab = slab.at[:H, C2:C2 + L].set(params["wc"])
    slab = slab.at[H, C2:C2 + L].set(params["bc"][0])
    slab = slab.at[H + 1, :T_HID].set(params["w2"][:, 0])
    slab = slab.at[H + 1, T_HID].set(params["b2"][0, 0])
    slab = slab.at[H + 1, C2 + L].set(1.0)
    return slab


def synthetic_base_hidden(params, input_ids):
    # Stand-in for base_model(...).hidden_states[-1]  -> [B, S, H]
    return jnp.take(params["emb"], input_ids, axis=0)


def dynamic_threshold_forward(params, slab, input_ids, attention_mask=None,
                              token_type_ids=None):
    # Full last-hidden tensor only for the hidden_states output (mirrors the
    # PyTorch OutputWrapper); the kernel's CLS input is gathered directly from
    # input_ids[:, 0] so no [B, S, H] slice feeds the head.
    hidden_last = synthetic_base_hidden(params, input_ids)       # [B, S, H]
    cls_hidden = jnp.take(params["emb"], input_ids[:, 0], axis=0)  # [B, H]

    # Pad batch to 8 sublanes -> unmasked loads and one unmasked output store.
    cls_pad = jnp.zeros((B_PAD, H), jnp.float32).at[:B, :].set(cls_hidden)

    vmem = pl.BlockSpec(memory_space=pltpu.MemorySpace.VMEM)
    packed = pl.pallas_call(
        head_kernel,
        out_shape=jax.ShapeDtypeStruct((B_PAD, OUT_W), jnp.float32),
        in_specs=[vmem, vmem],
        out_specs=vmem,
    )(cls_pad, slab)                                              # [8, 128]

    # Padded rows (>= B) carry bc / sigmoid(b2); always slice [:B] first.
    original_logits = packed[:B, :L]                              # [B, L]
    predicted_threshold = packed[:B, L:L + 1]                     # [B, 1]

    # original_logits.unsqueeze(1).expand(-1, sequence_length, -1) — lazy
    # broadcast in the wrapper (fuses into the consumer; no in-kernel store).
    reshaped_logits = jnp.broadcast_to(original_logits[:, None, :], (B, S, L))

    # Mirror OutputWrapper(logits, hidden_states); the PyTorch forward computes
    # predicted_threshold but discards it — returned alongside for inspection.
    return {
        "logits": reshaped_logits,                    # [B, S, L]
        "hidden_states": (hidden_last,),              # last-layer hidden states
        "_predicted_threshold": predicted_threshold,  # [B, 1] (unused in wrapper)
    }


def _reference(params, input_ids):
    hidden_last = synthetic_base_hidden(params, input_ids)
    cls = hidden_last[:, 0, :]
    pooled = jnp.tanh(cls @ params["wp"] + params["bp"])
    logits = pooled @ params["wc"] + params["bc"]
    reshaped = jnp.broadcast_to(logits[:, None, :], (B, S, L))
    h = jnp.maximum(cls @ params["w1"] + params["b1"], 0.0)
    thr = jax.nn.sigmoid(h @ params["w2"] + params["b2"])
    return reshaped, thr


if __name__ == "__main__":
    key = jax.random.PRNGKey(0)
    k_param, k_ids = jax.random.split(key)
    params = make_params(k_param)
    slab = pack_params(params)   # packed once; weights stay resident as one slab

    input_ids = jax.random.randint(k_ids, (B, S), 0, VOCAB, dtype=jnp.int32)
    attention_mask = jnp.ones((B, S), dtype=jnp.int32)

    out = dynamic_threshold_forward(params, slab, input_ids, attention_mask)
    jax.block_until_ready(out["logits"])
    jax.block_until_ready(out["_predicted_threshold"])

    ref_logits, ref_thr = _reference(params, input_ids)
    assert out["logits"].shape == (B, S, L)
    assert out["_predicted_threshold"].shape == (B, 1)
    assert jnp.allclose(out["logits"], ref_logits, atol=1e-5, rtol=1e-5)
    assert jnp.allclose(out["_predicted_threshold"], ref_thr, atol=1e-5, rtol=1e-5)

    print("KERNEL_OK")
</pallas_src>

<mosaic_0001>
module attributes {stable_mosaic.version = 11 : i64} {
  func.func @head_kernel(%arg0: memref<8x32xf32, #tpu.memory_space<vmem>>, %arg1: memref<34x384xf32, #tpu.memory_space<vmem>>, %arg2: memref<8x128xf32, #tpu.memory_space<vmem>>) attributes {dimension_semantics = [], scalar_prefetch = 0 : i64, scratch_operands = 0 : i64, tpu.core_type = #tpu.core_type<tc>} {
    %c0 = arith.constant 0 : index
    %c0_0 = arith.constant 0 : index
    %0 = vector.load %arg0[%c0, %c0_0] : memref<8x32xf32, #tpu.memory_space<vmem>>, vector<8x32xf32>
    %c0_1 = arith.constant 0 : index
    %c0_2 = arith.constant 0 : index
    %1 = vector.load %arg1[%c0_1, %c0_2] : memref<34x384xf32, #tpu.memory_space<vmem>>, vector<32x256xf32>
    %c32 = arith.constant 32 : index
    %c0_3 = arith.constant 0 : index
    %2 = vector.load %arg1[%c32, %c0_3] : memref<34x384xf32, #tpu.memory_space<vmem>>, vector<1x256xf32>
    %cst = arith.constant dense<0.000000e+00> : vector<8x256xf32>
    %3 = tpu.matmul %0, %1, %cst {dimension_numbers = #tpu.dot_dimension_numbers<[1], [0], [0], [1], [0, 0, 1, 1], [], []>} : vector<8x32xf32>, vector<32x256xf32>, vector<8x256xf32> -> vector<8x256xf32>
    %4 = vector.broadcast %2 : vector<1x256xf32> to vector<8x256xf32>
    %5 = arith.addf %3, %4 : vector<8x256xf32>
    %6 = vector.extract_strided_slice %5 {offsets = [0, 0], sizes = [8, 128], strides = [1, 1]} : vector<8x256xf32> to vector<8x128xf32>
    %cst_4 = arith.constant 0.000000e+00 : f32
    %7 = vector.broadcast %cst_4 : f32 to vector<8x128xf32>
    %8 = arith.maximumf %6, %7 : vector<8x128xf32>
    %9 = vector.extract_strided_slice %5 {offsets = [0, 128], sizes = [8, 32], strides = [1, 1]} : vector<8x256xf32> to vector<8x32xf32>
    %10 = math.tanh %9 : vector<8x32xf32>
    %c0_5 = arith.constant 0 : index
    %c256 = arith.constant 256 : index
    %11 = vector.load %arg1[%c0_5, %c256] : memref<34x384xf32, #tpu.memory_space<vmem>>, vector<32x128xf32>
    %c32_6 = arith.constant 32 : index
    %c256_7 = arith.constant 256 : index
    %12 = vector.load %arg1[%c32_6, %c256_7] : memref<34x384xf32, #tpu.memory_space<vmem>>, vector<1x128xf32>
    %cst_8 = arith.constant dense<0.000000e+00> : vector<8x128xf32>
    %13 = tpu.matmul %10, %11, %cst_8 {dimension_numbers = #tpu.dot_dimension_numbers<[1], [0], [0], [1], [0, 0, 1, 1], [], []>} : vector<8x32xf32>, vector<32x128xf32>, vector<8x128xf32> -> vector<8x128xf32>
    %14 = vector.broadcast %12 : vector<1x128xf32> to vector<8x128xf32>
    %15 = arith.addf %13, %14 : vector<8x128xf32>
    %c33 = arith.constant 33 : index
    %c0_9 = arith.constant 0 : index
    %16 = vector.load %arg1[%c33, %c0_9] : memref<34x384xf32, #tpu.memory_space<vmem>>, vector<1x128xf32>
    %c33_10 = arith.constant 33 : index
    %c128 = arith.constant 128 : index
    %17 = vector.load %arg1[%c33_10, %c128] : memref<34x384xf32, #tpu.memory_space<vmem>>, vector<1x1xf32>
    %c33_11 = arith.constant 33 : index
    %c256_12 = arith.constant 256 : index
    %18 = vector.load %arg1[%c33_11, %c256_12] : memref<34x384xf32, #tpu.memory_space<vmem>>, vector<1x128xf32>
    %19 = vector.broadcast %16 : vector<1x128xf32> to vector<8x128xf32>
    %20 = arith.mulf %8, %19 : vector<8x128xf32>
    %cst_13 = arith.constant dense<0.000000e+00> : vector<8xf32>
    %21 = vector.multi_reduction <add>, %20, %cst_13 [1] : vector<8x128xf32> to vector<8xf32>
    %22 = vector.shape_cast %21 : vector<8xf32> to vector<8x1xf32>
    %23 = vector.broadcast %17 : vector<1x1xf32> to vector<8x1xf32>
    %24 = arith.addf %22, %23 : vector<8x1xf32>
    %25 = arith.negf %24 : vector<8x1xf32>
    %26 = math.exp %25 : vector<8x1xf32>
    %cst_14 = arith.constant 1.000000e+00 : f32
    %27 = vector.broadcast %cst_14 : f32 to vector<8x1xf32>
    %28 = arith.addf %27, %26 : vector<8x1xf32>
    %29 = arith.divf %27, %28 : vector<8x1xf32>
    %30 = vector.broadcast %29 : vector<8x1xf32> to vector<8x128xf32>
    %31 = vector.broadcast %18 : vector<1x128xf32> to vector<8x128xf32>
    %32 = arith.mulf %30, %31 : vector<8x128xf32>
    %33 = arith.addf %15, %32 : vector<8x128xf32>
    %c0_15 = arith.constant 0 : index
    %c0_16 = arith.constant 0 : index
    %34 = vector.load %arg2[%c0_15, %c0_16] : memref<8x128xf32, #tpu.memory_space<vmem>>, vector<8x128xf32>
    tpu.vector_store %arg2[%c0_15, %c0_16], %33 {strides = array<i32>} : memref<8x128xf32, #tpu.memory_space<vmem>>, vector<8x128xf32>,
    return
  }
}

</mosaic_0001>

<llo_original>
// kernel: tpu_custom_call.1
$region0: #{tpu_custom_call.1}
  #allocation0 [shape = 'u32[]', space=smem, size = 0x4, offset = 0x4, fixed_abs, tag = 'smem constant byte address 0x4 - core index']
  #allocation1 [shape = 'u32[144,128]{1,0:T(1,128)}', space=vmem, size = 0x12000, scoped, tag = 'internal scratch']
  %s0 = inlined_call_operand.hbm [shape: f32[8,32], index: 0, kind: input, shape index: {}]
  %s1 = inlined_call_operand.hbm [shape: f32[34,384], index: 1, kind: input, shape index: {}]
  %s2 = inlined_call_operand.hbm [shape: f32[8,128], index: 2, kind: output, shape index: {}]
  %s3 = sld [smem:[#allocation0]]
  $region26: #{tpu_custom_call.1} parent=0
    _
  %s5 = ssub.s32 1, %s3
  %s6 = scalar_select 0, %s5, %s3
  $region1: #{tpu_custom_call.1} parent=0
    #allocation2 [shape = 'u8[4096]{0}', space=vmem, size = 0x1000, scoped, tag = 'input window, operand 0, single buffered']
    #allocation3 [shape = 's32[1]{0}', space=sflag, size = 0x4, scoped, tag = 'scoped memory for tpu_custom_call.1']
    #allocation4 [shape = 's32[1]{0}', space=sflag, size = 0x4, scoped, tag = 'scoped memory for tpu_custom_call.1']
    #allocation5 [shape = 'u8[61440]{0}', space=vmem, size = 0xf000, scoped, tag = 'input window, operand 1, single buffered']
    #allocation6 [shape = 's32[1]{0}', space=sflag, size = 0x4, scoped, tag = 'scoped memory for tpu_custom_call.1']
    #allocation7 [shape = 'u8[4096]{0}', space=vmem, size = 0x1000, scoped, tag = 'output window, operand 0, single buffered']
    %7 = vsyncpa [#allocation3], 0
    %8 = vsyncpa [#allocation6], 0
    %9 = vsyncpa [#allocation4], 0
    // Predicated region
    $region2: #{tpu_custom_call.1} parent=1 // pred_check
      _
    $region3: #{tpu_custom_call.1} parent=1 // pred_check_branch
      %11 = sbr.rel (0) target = $region5
    $region4: #{tpu_custom_call.1} parent=1 // pred_region
      %s13 = ssub.s32 128, 128
      %14 = vsyncadd [#allocation3], %s13
      %s16 = sshll.u32 [#allocation2], 4
      %s17 = int_to_ptr.vmem [resolvable:$true] %s16
      %19 = dma.hbm_to_vmem [thread:$0]  %s0, 128, %s17, [#allocation3]
    $region5: #{tpu_custom_call.1} parent=1 // pred_fallthru
      _
    // Predicated region
    $region6: #{tpu_custom_call.1} parent=1 // pred_check
      _
    $region7: #{tpu_custom_call.1} parent=1 // pred_check_branch
      %21 = sbr.rel (0) target = $region9
    $region8: #{tpu_custom_call.1} parent=1 // pred_region
      %s23 = ssub.s32 1920, 1920
      %24 = vsyncadd [#allocation6], %s23
      %s25 = sshll.u32 [#allocation5], 4
      %s26 = int_to_ptr.vmem [resolvable:$true] %s25
      %31 = dma.hbm_to_vmem [thread:$0]  %s1, 1920, %s26, [#allocation6], 384, 384, 24
    $region9: #{tpu_custom_call.1} parent=1 // pred_fallthru
      _
    // Predicated region
    $region10: #{tpu_custom_call.1} parent=1 // pred_check
      _
    $region11: #{tpu_custom_call.1} parent=1 // pred_check_branch
      %33 = sbr.rel (0) target = $region13
    $region12: #{tpu_custom_call.1} parent=1 // pred_region
      %34 = dma.done [#allocation3], 128
    $region13: #{tpu_custom_call.1} parent=1 // pred_fallthru
      _
    // Predicated region
    $region14: #{tpu_custom_call.1} parent=1 // pred_check
      _
    $region15: #{tpu_custom_call.1} parent=1 // pred_check_branch
      %36 = sbr.rel (0) target = $region17
    $region16: #{tpu_custom_call.1} parent=1 // pred_region
      %37 = dma.done [#allocation6], 1920
    $region17: #{tpu_custom_call.1} parent=1 // pred_fallthru
      _
    %v38 = vld [vmem:[#allocation2] sm:$0xff]
    %v39 = vld [vmem:[#allocation5] sm:$0xff]
    %v40 = vld [vmem:[#allocation5 + $0x8] sm:$0xff]
    %v41 = vld [vmem:[#allocation5 + $0x18] sm:$0xff]
    %v42 = vld [vmem:[#allocation5 + $0x20] sm:$0xff]
    %v43 = vld [vmem:[#allocation5 + $0x30] sm:$0xff]
    %v44 = vld [vmem:[#allocation5 + $0x38] sm:$0xff]
    %v45 = vld [vmem:[#allocation5 + $0x48] sm:$0xff]
    %v46 = vld [vmem:[#allocation5 + $0x50] sm:$0xff]
    %s47 = scalar_lea.vmem [#allocation5], 96
    %v48 = vld [vmem:[%s47] ss:$8 sm:$0x3]
    %v50 = vlaneseq
    %v51 = vshrl.u32 %v50, 7
    %v52 = vsub.s32 0, %v51
    %v53 = vrot.slane %v48, %v52
    %v54 = vlaneseq
    %v55 = vshrl.u32 %v54, 7
    %v56 = vsub.s32 1, %v55
    %v57 = vrot.slane %v48, %v56
    %vm60 = vcmask 261120
    %v62 = vsel %vm60, %v38, 0
    %64 = vmatprep.subr.mxu0 %v40
    %65 = vmatpush1.msra.mxu0 %v39
    %66 = vmatprep.subr.mxu0 %v42
    %67 = vmatpush1.msra.mxu0 %v41
    %68 = vmatprep.subr.mxu0 %v44
    %69 = vmatpush1.msra.mxu0 %v43
    %70 = vmatprep.subr.mxu0 %v46
    %71 = vmatpush1.msra.mxu0 %v45
    %72 = vmatprep.subr.mxu0 0.0
    %73 = vmatpush1.msra.mxu0 0.0
    %74 = vmatprep.subr.mxu0 0.0
    %75 = vmatpush1.msra.mxu0 0.0
    %76 = vmatprep.subr.mxu0 0.0
    %77 = vmatpush1.msra.mxu0 0.0
    %78 = vmatprep.subr.mxu0 0.0
    %79 = vmatpush1.msra.mxu0 0.0
    %80 = vmatprep.subr.mxu0 0.0
    %81 = vmatpush1.msra.mxu0 0.0
    %82 = vmatprep.subr.mxu0 0.0
    %83 = vmatpush1.msra.mxu0 0.0
    %84 = vmatprep.subr.mxu0 0.0
    %85 = vmatpush1.msra.mxu0 0.0
    %86 = vmatprep.subr.mxu0 0.0
    %87 = vmatpush1.msra.mxu0 0.0
    %88 = vmatprep.subr.mxu0 0.0
    %89 = vmatpush1.msra.mxu0 0.0
    %90 = vmatprep.subr.mxu0 0.0
    %91 = vmatpush1.msra.mxu0 0.0
    %92 = vmatprep.subr.mxu0 0.0
    %93 = vmatpush1.msra.mxu0 0.0
    %94 = vmatprep.subr.mxu0 0.0
    %95 = vmatpush1.msra.mxu0 0.0
    %96 = vmatprep.subr.mxu0 0.0
    %97 = vmatpush1.msra.mxu0 0.0
    %98 = vmatprep.subr.mxu0 0.0
    %99 = vmatpush1.msra.mxu0 0.0
    %100 = vmatprep.subr.mxu0 0.0
    %101 = vmatpush1.msra.mxu0 0.0
    %102 = vmatprep.subr.mxu0 0.0
    %103 = vmatpush1.msra.mxu0 0.0
    %104 = vmatprep.subr.mxu0 0.0
    %105 = vmatpush1.msra.mxu0 0.0
    %106 = vmatprep.subr.mxu0 0.0
    %107 = vmatpush1.msra.mxu0 0.0
    %108 = vmatprep.subr.mxu0 0.0
    %109 = vmatpush1.msra.mxu0 0.0
    %110 = vmatprep.subr.mxu0 0.0
    %111 = vmatpush1.msra.mxu0 0.0
    %112 = vmatprep.subr.mxu0 0.0
    %113 = vmatpush1.msra.mxu0 0.0
    %114 = vmatprep.subr.mxu0 0.0
    %115 = vmatpush1.msra.mxu0 0.0
    %116 = vmatprep.subr.mxu0 0.0
    %117 = vmatpush1.msra.mxu0 0.0
    %118 = vmatprep.subr.mxu0 0.0
    %119 = vmatpush1.msra.mxu0 0.0
    %120 = vmatprep.subr.mxu0 0.0
    %121 = vmatpush1.msra.mxu0 0.0
    %122 = vmatprep.subr.mxu0 0.0
    %123 = vmatpush1.msra.mxu0 0.0
    %124 = vmatprep.subr.mxu0 0.0
    %125 = vmatpush1.msra.mxu0 0.0
    %126 = vmatprep.subr.mxu0 0.0
    %127 = vmatpush1.msra.mxu0 0.0
    %128 = vmatprep.mubr.f32.mxu0 0.0
    %129 = vmatmul.mubr.f32.gmra.mrb[0].mxu0 %v62
    %v130 = vpop.f32.mrb[0].mxu0
    %v131 = vadd.f32 %v53, %v130
    %v132 = vpop.f32.mrb[0].mxu0
    %v133 = vadd.f32 %v57, %v132
    %134 = vdwg.mxu0
    %v135 = vmax.f32 %v131, 0.0
    %v136 = vtanh.pop %v133
    %v137 = vld [vmem:[#allocation5 + $0x10] sm:$0xff]
    %v138 = vld [vmem:[#allocation5 + $0x28] sm:$0xff]
    %v139 = vld [vmem:[#allocation5 + $0x40] sm:$0xff]
    %v140 = vld [vmem:[#allocation5 + $0x58] sm:$0xff]
    %v141 = vld [vmem:[#allocation5 + $0x70] ss:$0 sm:$0xff]
    %v143 = vsel %vm60, %v136, 0
    %145 = vmatprep.subr.mxu0 0.0
    %146 = vmatpush1.msra.mxu0 %v137
    %147 = vmatprep.subr.mxu0 0.0
    %148 = vmatpush1.msra.mxu0 %v138
    %149 = vmatprep.subr.mxu0 0.0
    %150 = vmatpush1.msra.mxu0 %v139
    %151 = vmatprep.subr.mxu0 0.0
    %152 = vmatpush1.msra.mxu0 %v140
    %153 = vmatprep.subr.mxu0 0.0
    %154 = vmatpush1.msra.mxu0 0.0
    %155 = vmatprep.subr.mxu0 0.0
    %156 = vmatpush1.msra.mxu0 0.0
    %157 = vmatprep.subr.mxu0 0.0
    %158 = vmatpush1.msra.mxu0 0.0
    %159 = vmatprep.subr.mxu0 0.0
    %160 = vmatpush1.msra.mxu0 0.0
    %161 = vmatprep.subr.mxu0 0.0
    %162 = vmatpush1.msra.mxu0 0.0
    %163 = vmatprep.subr.mxu0 0.0
    %164 = vmatpush1.msra.mxu0 0.0
    %165 = vmatprep.subr.mxu0 0.0
    %166 = vmatpush1.msra.mxu0 0.0
    %167 = vmatprep.subr.mxu0 0.0
    %168 = vmatpush1.msra.mxu0 0.0
    %169 = vmatprep.subr.mxu0 0.0
    %170 = vmatpush1.msra.mxu0 0.0
    %171 = vmatprep.subr.mxu0 0.0
    %172 = vmatpush1.msra.mxu0 0.0
    %173 = vmatprep.subr.mxu0 0.0
    %174 = vmatpush1.msra.mxu0 0.0
    %175 = vmatprep.subr.mxu0 0.0
    %176 = vmatpush1.msra.mxu0 0.0
    %177 = vmatprep.subr.mxu0 0.0
    %178 = vmatpush1.msra.mxu0 0.0
    %179 = vmatprep.subr.mxu0 0.0
    %180 = vmatpush1.msra.mxu0 0.0
    %181 = vmatprep.subr.mxu0 0.0
    %182 = vmatpush1.msra.mxu0 0.0
    %183 = vmatprep.subr.mxu0 0.0
    %184 = vmatpush1.msra.mxu0 0.0
    %185 = vmatprep.subr.mxu0 0.0
    %186 = vmatpush1.msra.mxu0 0.0
    %187 = vmatprep.subr.mxu0 0.0
    %188 = vmatpush1.msra.mxu0 0.0
    %189 = vmatprep.subr.mxu0 0.0
    %190 = vmatpush1.msra.mxu0 0.0
    %191 = vmatprep.subr.mxu0 0.0
    %192 = vmatpush1.msra.mxu0 0.0
    %193 = vmatprep.subr.mxu0 0.0
    %194 = vmatpush1.msra.mxu0 0.0
    %195 = vmatprep.subr.mxu0 0.0
    %196 = vmatpush1.msra.mxu0 0.0
    %197 = vmatprep.subr.mxu0 0.0
    %198 = vmatpush1.msra.mxu0 0.0
    %199 = vmatprep.subr.mxu0 0.0
    %200 = vmatpush1.msra.mxu0 0.0
    %201 = vmatprep.subr.mxu0 0.0
    %202 = vmatpush1.msra.mxu0 0.0
    %203 = vmatprep.subr.mxu0 0.0
    %204 = vmatpush1.msra.mxu0 0.0
    %205 = vmatprep.subr.mxu0 0.0
    %206 = vmatpush1.msra.mxu0 0.0
    %207 = vmatprep.subr.mxu0 0.0
    %208 = vmatpush1.msra.mxu0 0.0
    %209 = vmatprep.mubr.f32.mxu0 0.0
    %210 = vmatmul.mubr.f32.gmra.mrb[0].mxu0 %v143
    %v211 = vpop.f32.mrb[0].mxu0
    %v212 = vadd.f32 %v141, %v211
    %v213 = vpop.f32.mrb[0].mxu0
    %214 = vdwg.mxu0
    %v215 = vld [vmem:[#allocation5 + $0x61] ss:$0 sm:$0xff]
    %v216 = vld [vmem:[#allocation5 + $0x69] ss:$0 sm:$0xff]
    %v217 = vld [vmem:[#allocation5 + $0x71] ss:$0 sm:$0xff]
    %v218 = vmul.f32 %v135, %v215
    %219 = vadd.xlane.f32.xlu0 %v218
    %v220 = vpop.xlane.xlu0 %219
    %v221 = vadd.f32 %v220, %v216
    %v222 = vxor.u32 %v221, 2147483648
    %v223 = vmul.f32 %v222, 1.442695
    %v224 = vpow.pop %v223
    %v225 = vadd.f32 %v224, 1.0
    %v226 = vrcp.pop %v225
    %v227 = vmul.f32 1.0, %v226
    %229 = vset.pattern.permute.xlu0 0
    %230 = vperm.xlu0 %229, %v227
    %v231 = vpop.permute.xlu0 %230
    %v233 = vmul.f32 %v231, %v217
    %v234 = vadd.f32 %v212, %v233
    %235 = vst [vmem:[#allocation7] sm:$0xff] %v234
    // Predicated region
    $region18: #{tpu_custom_call.1} parent=1 // pred_check
      _
    $region19: #{tpu_custom_call.1} parent=1 // pred_check_branch
      %237 = sbr.rel (0) target = $region21
    $region20: #{tpu_custom_call.1} parent=1 // pred_region
      %s239 = ssub.s32 128, 128
      %240 = vsyncadd [#allocation4], %s239
      %s242 = sshll.u32 [#allocation7], 4
      %s243 = int_to_ptr.vmem [resolvable:$true] %s242
      %245 = dma.vmem_to_hbm [thread:$0]  %s243, 128, %s2, [#allocation4]
    $region21: #{tpu_custom_call.1} parent=1 // pred_fallthru
      _
    // Predicated region
    $region22: #{tpu_custom_call.1} parent=1 // pred_check
      _
    $region23: #{tpu_custom_call.1} parent=1 // pred_check_branch
      %247 = sbr.rel (0) target = $region25
    $region24: #{tpu_custom_call.1} parent=1 // pred_region
      %248 = dma.done [#allocation4], 128
    $region25: #{tpu_custom_call.1} parent=1 // pred_fallthru
      _
    %249 = vsyncpa [#allocation3], 1
    %250 = vsyncpa [#allocation6], 1
    %251 = vsyncpa [#allocation4], 1

</llo_original>
